<compile_context>
chip_gen: v7x
topology: tpu7x:2x2x1
jax: 0.10.0
libtpu: 0.0.40
codegen_flags: <defaults>
</compile_context>

<pallas_src>
import math

import jax
import jax.numpy as jnp
from jax.experimental import pallas as pl
from jax.experimental.pallas import tpu as pltpu


def cancelout_kernel(x_ref, w_ref, o_ref):
    # (1, Ff) gate row: sigmoid on the EUP slot; broadcast-multiply on VPU.
    gate = jax.nn.sigmoid(w_ref[...])                 # (1, Ff) float32
    x = x_ref[...].astype(jnp.float32)                # matches torch promotion
    o_ref[...] = (x * gate).astype(o_ref.dtype)


def _aligned_down(n, align):
    return max(align, (n // align) * align)


def _pick_tile_rows(Bf, Ff, in_bytes, out_bytes, row_align,
                    target_block_bytes=2 << 20, vmem_budget_bytes=32 << 20):
    """Pick a row-tile: ~target_block_bytes of input per step, double-buffered
    in+out working set under vmem_budget_bytes, multiple of row_align, and
    >=2 grid steps when the batch is big enough (pipelining / v7x dual TC)."""
    bytes_per_row = Ff * (in_bytes + out_bytes) * 2   # x2 for double buffering
    max_rows = _aligned_down(max(1, vmem_budget_bytes // bytes_per_row),
                             row_align)
    tgt_rows = _aligned_down(max(1, target_block_bytes // (Ff * in_bytes)),
                             row_align)
    tile = min(max_rows, tgt_rows)
    if Bf > 2 * row_align:
        half = _aligned_down(-(-Bf // 2), row_align)  # ~ceil(Bf/2), aligned
        tile = min(tile, half)
    if tile >= Bf:
        return Bf                                     # single full-extent block
    return tile


def _fold_factor(B, F, in_bytes, out_bytes, row_align,
                 vmem_budget_bytes=32 << 20):
    """Fold k rows into the lane axis so the last dim becomes a multiple of
    128 (unmasked full-lane stores).  Only when the flattened batch divides k
    and a minimal row-aligned tile at the folded width still fits VMEM."""
    if F % 128 == 0:
        return 1
    k = 128 // math.gcd(F, 128)
    if k <= 1 or B % k != 0:
        return 1
    Ff = k * F
    bytes_per_row = Ff * (in_bytes + out_bytes) * 2
    if bytes_per_row * row_align > vmem_budget_bytes:
        return 1                                      # folded rows too fat
    return k


def cancelout(x, weights, *, tile_b=None, vmem_limit_bytes=48 * 1024 * 1024):
    """x: any-rank array with trailing dim F; weights: (F,) parameter vector."""
    orig_shape = x.shape
    F = int(weights.shape[0])
    if x.ndim == 0 or int(x.shape[-1]) != F:
        raise ValueError("last dim of x must equal weights size")

    B = 1
    for d in x.shape[:-1]:
        B *= int(d)
    x2 = x.reshape(B, F)

    out_dtype = jnp.result_type(x.dtype, jnp.float32)
    w_row = weights.astype(jnp.float32).reshape(1, F)

    in_bytes = x2.dtype.itemsize
    out_bytes = jnp.dtype(out_dtype).itemsize
    row_align = 8 if in_bytes >= 4 else (16 if in_bytes == 2 else 32)

    # Lane-dense folding: fold k rows into the lane axis (gate is periodic).
    k = _fold_factor(B, F, in_bytes, out_bytes, row_align)
    Bf, Ff = B // k, k * F
    xf = x2.reshape(Bf, Ff) if k > 1 else x2
    wf = jnp.tile(w_row, (1, k)) if k > 1 else w_row

    if tile_b is None:
        tile_b = _pick_tile_rows(Bf, Ff, in_bytes, out_bytes, row_align)
    tile_b = min(int(tile_b), Bf)

    grid = (pl.cdiv(Bf, tile_b),)

    yf = pl.pallas_call(
        cancelout_kernel,
        out_shape=jax.ShapeDtypeStruct((Bf, Ff), out_dtype),
        grid_spec=pltpu.PrefetchScalarGridSpec(
            num_scalar_prefetch=0,
            grid=grid,
            in_specs=[
                pl.BlockSpec((tile_b, Ff), lambda i: (i, 0)),
                pl.BlockSpec((1, Ff), lambda i: (0, 0)),
            ],
            out_specs=pl.BlockSpec((tile_b, Ff), lambda i: (i, 0)),
        ),
        compiler_params=pltpu.CompilerParams(
            dimension_semantics=("parallel",),
            vmem_limit_bytes=vmem_limit_bytes,
        ),
    )(xf, wf)

    return yf.reshape(orig_shape)


if __name__ == "__main__":
    key = jax.random.PRNGKey(0)
    k1, k2, k3 = jax.random.split(key, 3)

    # Case 1: small 3-D tensor (batch=2, seq=4, features=32), float32.
    # F=32 -> k=4 fold to a lane-dense (2, 128) slab inside the wrapper.
    F = 32
    x = jax.random.normal(k1, (2, 4, F), dtype=jnp.float32)
    weights = jnp.zeros((F,), dtype=jnp.float32) + 4.0  # torch.zeros(inp) + 4
    y = jax.block_until_ready(cancelout(x, weights))
    y_ref = x.astype(jnp.float32) * jax.nn.sigmoid(weights)
    assert y.shape == x.shape and y.dtype == y_ref.dtype
    assert jnp.allclose(y, y_ref, atol=1e-6, rtol=1e-6)

    # Case 2: bf16 matrix with a ragged row count (exercises auto row tiling,
    # the cdiv/masked last block, and float32 promotion like torch).
    F2 = 96
    x2 = jax.random.normal(k2, (1037, F2), dtype=jnp.bfloat16)
    w2 = jnp.zeros((F2,), dtype=jnp.float32) + 4.0
    y2 = jax.block_until_ready(cancelout(x2, w2))
    y2_ref = x2.astype(jnp.float32) * jax.nn.sigmoid(w2)
    assert y2.dtype == jnp.float32
    assert jnp.allclose(y2, y2_ref, atol=1e-5, rtol=1e-5)

    # Case 3: bf16 3-D tensor with F=96 and a fold-friendly batch
    # (exercises the generalized k=128/gcd(F,128)=4 lane fold -> 384 lanes).
    F3 = 96
    x3 = jax.random.normal(k3, (8, 16, F3), dtype=jnp.bfloat16)
    w3 = jnp.zeros((F3,), dtype=jnp.float32) + 4.0
    y3 = jax.block_until_ready(cancelout(x3, w3))
    y3_ref = x3.astype(jnp.float32) * jax.nn.sigmoid(w3)
    assert y3.shape == x3.shape and y3.dtype == jnp.float32
    assert jnp.allclose(y3, y3_ref, atol=1e-5, rtol=1e-5)

    print("KERNEL_OK")
</pallas_src>

<mosaic_0001>
module attributes {stable_mosaic.version = 11 : i64} {
  func.func @cancelout_kernel(%arg0: i32, %arg1: memref<2x128xf32, #tpu.memory_space<vmem>>, %arg2: memref<1x128xf32, #tpu.memory_space<vmem>>, %arg3: memref<2x128xf32, #tpu.memory_space<vmem>>) attributes {dimension_semantics = [#tpu.dimension_semantics<parallel>], iteration_bounds = array<i64: 1>, scalar_prefetch = 0 : i64, scratch_operands = 0 : i64, tpu.core_type = #tpu.core_type<tc>, window_params = [{transform_indices = @transform_0, window_bounds = array<i64: 2, 128>}, {pipeline_mode = #tpu.pipeline_mode<synchronous>, transform_indices = @transform_1, window_bounds = array<i64: 1, 128>}, {transform_indices = @transform_2, window_bounds = array<i64: 2, 128>}]} {
    %c0 = arith.constant 0 : index
    %c0_0 = arith.constant 0 : index
    %0 = vector.load %arg2[%c0, %c0_0] : memref<1x128xf32, #tpu.memory_space<vmem>>, vector<1x128xf32>
    %1 = arith.negf %0 : vector<1x128xf32>
    %2 = math.exp %1 : vector<1x128xf32>
    %cst = arith.constant 1.000000e+00 : f32
    %3 = vector.broadcast %cst : f32 to vector<1x128xf32>
    %4 = arith.addf %3, %2 : vector<1x128xf32>
    %5 = arith.divf %3, %4 : vector<1x128xf32>
    %c0_1 = arith.constant 0 : index
    %c0_2 = arith.constant 0 : index
    %6 = vector.load %arg1[%c0_1, %c0_2] : memref<2x128xf32, #tpu.memory_space<vmem>>, vector<2x128xf32>
    %7 = vector.broadcast %5 : vector<1x128xf32> to vector<2x128xf32>
    %8 = arith.mulf %6, %7 : vector<2x128xf32>
    %c0_3 = arith.constant 0 : index
    %c0_4 = arith.constant 0 : index
    %9 = vector.load %arg3[%c0_3, %c0_4] : memref<2x128xf32, #tpu.memory_space<vmem>>, vector<2x128xf32>
    tpu.vector_store %arg3[%c0_3, %c0_4], %8 {strides = array<i32>} : memref<2x128xf32, #tpu.memory_space<vmem>>, vector<2x128xf32>,
    return
  }
  func.func @transform_0(%arg0: i32) -> (i32, i32) {
    %c0_i32 = arith.constant 0 : i32
    %c0_i32_0 = arith.constant 0 : i32
    return %arg0, %c0_i32 : i32, i32
  }
  func.func @transform_1(%arg0: i32) -> (i32, i32) {
    %c0_i32 = arith.constant 0 : i32
    %c0_i32_0 = arith.constant 0 : i32
    %c0_i32_1 = arith.constant 0 : i32
    return %c0_i32, %c0_i32_0 : i32, i32
  }
  func.func @transform_2(%arg0: i32) -> (i32, i32) {
    %c0_i32 = arith.constant 0 : i32
    %c0_i32_0 = arith.constant 0 : i32
    return %arg0, %c0_i32 : i32, i32
  }
}

</mosaic_0001>

<llo_original>
// kernel: tpu_custom_call.1
$region0: #{tpu_custom_call.1}
  #allocation0 [shape = 'u32[]', space=smem, size = 0x4, offset = 0x4, fixed_abs, tag = 'smem constant byte address 0x4 - core index']
  #allocation1 [shape = 'u32[144,128]{1,0:T(1,128)}', space=vmem, size = 0x12000, scoped, tag = 'internal scratch']
  %s0 = inlined_call_operand.hbm [shape: f32[2,128], index: 0, kind: input, shape index: {}]
  %s1 = inlined_call_operand.vmem [shape: f32[1,128], index: 1, kind: input, shape index: {}]
  %s2 = inlined_call_operand.hbm [shape: f32[2,128], index: 2, kind: output, shape index: {}]
  %s3 = sld [smem:[#allocation0]]
  $region22: #{tpu_custom_call.1} parent=0
    _
  %s5 = ssub.s32 1, %s3
  %s6 = scalar_select 0, %s5, %s3
  $region1: #{tpu_custom_call.1} parent=0
    #allocation2 [shape = 'u8[1024]{0}', space=vmem, size = 0x400, scoped, tag = 'input window, operand 0, single buffered']
    #allocation3 [shape = 's32[1]{0}', space=sflag, size = 0x4, scoped, tag = 'scoped memory for tpu_custom_call.1']
    #allocation4 [shape = 's32[1]{0}', space=sflag, size = 0x4, scoped, tag = 'scoped memory for tpu_custom_call.1']
    #allocation5 [shape = 'u8[1024]{0}', space=vmem, size = 0x400, scoped, tag = 'output window, operand 0, single buffered']
    %7 = vsyncpa [#allocation3], 0
    %8 = vsyncpa [#allocation4], 0
    // Predicated region
    $region2: #{tpu_custom_call.1} parent=1 // pred_check
      _
    $region3: #{tpu_custom_call.1} parent=1 // pred_check_branch
      %10 = sbr.rel (0) target = $region5
    $region4: #{tpu_custom_call.1} parent=1 // pred_region
      %s12 = ssub.s32 32, 32
      %13 = vsyncadd [#allocation3], %s12
      %s15 = sshll.u32 [#allocation2], 4
      %s16 = int_to_ptr.vmem [resolvable:$true] %s15
      %18 = dma.hbm_to_vmem [thread:$0]  %s0, 32, %s16, [#allocation3]
    $region5: #{tpu_custom_call.1} parent=1 // pred_fallthru
      _
    // Predicated region
    $region6: #{tpu_custom_call.1} parent=1 // pred_check
      _
    $region7: #{tpu_custom_call.1} parent=1 // pred_check_branch
      %20 = sbr.rel (0) target = $region9
    $region8: #{tpu_custom_call.1} parent=1 // pred_region
      _
    $region9: #{tpu_custom_call.1} parent=1 // pred_fallthru
      _
    // Predicated region
    $region10: #{tpu_custom_call.1} parent=1 // pred_check
      _
    $region11: #{tpu_custom_call.1} parent=1 // pred_check_branch
      %22 = sbr.rel (0) target = $region13
    $region12: #{tpu_custom_call.1} parent=1 // pred_region
      %23 = dma.done [#allocation3], 32
    $region13: #{tpu_custom_call.1} parent=1 // pred_fallthru
      _
    %v24 = vld [vmem:[%s1] sm:$0x1]
    %v25 = vxor.u32 %v24, 2147483648
    %v26 = vmul.f32 %v25, 1.442695
    %v27 = vpow.pop %v26
    %v28 = vadd.f32 %v27, 1.0
    %v29 = vrcp.pop %v28
    %v30 = vmul.f32 1.0, %v29
    %v31 = vld [vmem:[#allocation2] sm:$0x3]
    %v33 = vlaneseq
    %v34 = vshrl.u32 %v33, 7
    %v35 = vsub.s32 0, %v34
    %v36 = vrot.slane %v30, %v35
    %v38 = vmul.f32 %v31, %v36
    %39 = vst [vmem:[#allocation5] sm:$0x3] %v38
    // Predicated region
    $region14: #{tpu_custom_call.1} parent=1 // pred_check
      _
    $region15: #{tpu_custom_call.1} parent=1 // pred_check_branch
      %41 = sbr.rel (0) target = $region17
    $region16: #{tpu_custom_call.1} parent=1 // pred_region
      %s43 = ssub.s32 32, 32
      %44 = vsyncadd [#allocation4], %s43
      %s46 = sshll.u32 [#allocation5], 4
      %s47 = int_to_ptr.vmem [resolvable:$true] %s46
      %49 = dma.vmem_to_hbm [thread:$0]  %s47, 32, %s2, [#allocation4]
    $region17: #{tpu_custom_call.1} parent=1 // pred_fallthru
      _
    // Predicated region
    $region18: #{tpu_custom_call.1} parent=1 // pred_check
      _
    $region19: #{tpu_custom_call.1} parent=1 // pred_check_branch
      %51 = sbr.rel (0) target = $region21
    $region20: #{tpu_custom_call.1} parent=1 // pred_region
      %52 = dma.done [#allocation4], 32
    $region21: #{tpu_custom_call.1} parent=1 // pred_fallthru
      _
    %53 = vsyncpa [#allocation3], 1
    %54 = vsyncpa [#allocation4], 1

</llo_original>
